<compile_context>
chip_gen: v7x
topology: tpu7x:2x2x1
jax: 0.10.0
libtpu: 0.0.40
codegen_flags: <defaults>
</compile_context>

<pallas_src>
import jax
import jax.numpy as jnp
from jax.experimental import pallas as pl
from jax.experimental.pallas import tpu as pltpu

_INV_SQRT2 = 0.7071067811865476
_BN_EPS = 1e-5
_MAX_UNROLL_BT = 8        # cap on per-step batch unroll in the tiled path
_MAX_FUSED_B = 32         # cap on batch unroll in the fused path


def _gelu_exact(x):
    # PyTorch nn.GELU() default: exact erf formulation.
    return 0.5 * x * (1.0 + jax.lax.erf(x * _INV_SQRT2))


def _fold_bn(s, sq, gamma, beta, inv_n):
    """Fold training-mode BN (biased variance) into per-channel scale/shift."""
    # TODO(synk): E[h^2]-mean^2 in f32 can cancel badly for very large B*HW;
    # switch to a centered (two-pass) variance if shapes grow that far.
    mean = s * inv_n
    var = jnp.maximum(sq * inv_n - mean * mean, 0.0)
    scale = gamma * jax.lax.rsqrt(var + _BN_EPS)
    shift = beta - mean * scale
    return scale, shift


def _vmem_budget_bytes():
    """Generation-aware VMEM budget: half of physical, capped at 64 MiB.

    v5e/v6e (128 MiB physical) -> 64 MiB; v7x (64 MiB physical) -> 32 MiB.
    """
    try:
        cap = int(pltpu.get_tpu_info().vmem_capacity_bytes)
    except Exception:
        cap = 64 * 1024 * 1024          # conservative (v7x physical)
    return int(min(cap // 2, 64 * 1024 * 1024))


# --------------------------- fused single-call path ------------------------
def _make_fused_kernel(inv_n):
    """Whole activation resident in VMEM: stats1 -> fold -> stats2 -> fold -> out."""
    def kernel(x_ref, w1_ref, w2_ref, gamma_ref, beta_ref, o_ref):
        w1 = w1_ref[...]
        w2 = w2_ref[...]
        gamma = gamma_ref[...]          # (Cout, 1)
        beta = beta_ref[...]            # (Cout, 1)
        nb = x_ref.shape[0]

        # ---- BN1 stats over h1 = W1 @ x (bias dropped; cancelled by BN) ----
        s1 = jnp.zeros_like(gamma)
        q1 = jnp.zeros_like(gamma)
        for b in range(nb):
            h1 = jnp.dot(w1, x_ref[b], preferred_element_type=jnp.float32)
            s1 = s1 + jnp.sum(h1, axis=1, keepdims=True)
            q1 = q1 + jnp.sum(h1 * h1, axis=1, keepdims=True)
        scale1, shift1 = _fold_bn(s1, q1, gamma, beta, inv_n)

        # ---- BN2 stats over h2 = W2 @ gelu(bn1(h1)) (h1 recomputed, cheap) --
        s2 = jnp.zeros_like(gamma)
        q2 = jnp.zeros_like(gamma)
        for b in range(nb):
            h1 = jnp.dot(w1, x_ref[b], preferred_element_type=jnp.float32)
            g1 = _gelu_exact(h1 * scale1 + shift1)
            h2 = jnp.dot(w2, g1, preferred_element_type=jnp.float32)
            s2 = s2 + jnp.sum(h2, axis=1, keepdims=True)
            q2 = q2 + jnp.sum(h2 * h2, axis=1, keepdims=True)
        scale2, shift2 = _fold_bn(s2, q2, gamma, beta, inv_n)

        # ---- final elementwise pass -----------------------------------------
        for b in range(nb):
            h1 = jnp.dot(w1, x_ref[b], preferred_element_type=jnp.float32)
            g1 = _gelu_exact(h1 * scale1 + shift1)
            h2 = jnp.dot(w2, g1, preferred_element_type=jnp.float32)
            o_ref[b] = _gelu_exact(h2 * scale2 + shift2).astype(o_ref.dtype)

    return kernel


# --------------------------- tiled 3-pass path ------------------------------
def _stats1_kernel(x_ref, w1_ref, sum_ref, sumsq_ref):
    """Pass A: per-channel sum / sum-of-squares of h1 = W1 @ x.

    Padded pixel columns are zero and bias-free -> contribute exactly 0, so no
    masking is needed here.
    """
    @pl.when(pl.program_id(1) == 0)
    def _():
        sum_ref[...] = jnp.zeros_like(sum_ref)
        sumsq_ref[...] = jnp.zeros_like(sumsq_ref)

    w1 = w1_ref[...]
    s = jnp.zeros(sum_ref.shape, jnp.float32)
    q = jnp.zeros(sum_ref.shape, jnp.float32)
    for b in range(x_ref.shape[0]):
        h1 = jnp.dot(w1, x_ref[b], preferred_element_type=jnp.float32)
        s = s + jnp.sum(h1, axis=1, keepdims=True)
        q = q + jnp.sum(h1 * h1, axis=1, keepdims=True)
    sum_ref[...] += s
    sumsq_ref[...] += q


def _make_stats2_kernel(hw_valid, tile, need_mask):
    """Pass B: recompute conv1 + folded BN1 + GELU + conv2, accumulate stats.

    Padded pixels produce h1=0 -> g1=gelu(shift1) != 0 -> h2 != 0, so they
    MUST be masked out of the BN2 statistics when padding exists.
    """
    def kernel(x_ref, w1_ref, w2_ref, scale1_ref, shift1_ref,
               sum_ref, sumsq_ref):
        @pl.when(pl.program_id(1) == 0)
        def _():
            sum_ref[...] = jnp.zeros_like(sum_ref)
            sumsq_ref[...] = jnp.zeros_like(sumsq_ref)

        w1 = w1_ref[...]
        w2 = w2_ref[...]
        scale1 = scale1_ref[...]
        shift1 = shift1_ref[...]
        if need_mask:
            col = (jax.lax.broadcasted_iota(jnp.int32, (1, tile), 1)
                   + pl.program_id(1) * tile)
            mask = (col < hw_valid).astype(jnp.float32)

        s = jnp.zeros(sum_ref.shape, jnp.float32)
        q = jnp.zeros(sum_ref.shape, jnp.float32)
        for b in range(x_ref.shape[0]):
            h1 = jnp.dot(w1, x_ref[b], preferred_element_type=jnp.float32)
            g1 = _gelu_exact(h1 * scale1 + shift1)
            h2 = jnp.dot(w2, g1, preferred_element_type=jnp.float32)
            if need_mask:
                h2 = h2 * mask
            s = s + jnp.sum(h2, axis=1, keepdims=True)
            q = q + jnp.sum(h2 * h2, axis=1, keepdims=True)
        sum_ref[...] += s
        sumsq_ref[...] += q

    return kernel


def _final_kernel(x_ref, w1_ref, w2_ref, scale1_ref, shift1_ref,
                  scale2_ref, shift2_ref, o_ref):
    """Pass C: independent per tile -> megacore-parallel; lane-dense stores."""
    w1 = w1_ref[...]
    w2 = w2_ref[...]
    scale1 = scale1_ref[...]
    shift1 = shift1_ref[...]
    scale2 = scale2_ref[...]
    shift2 = shift2_ref[...]
    for b in range(x_ref.shape[0]):
        h1 = jnp.dot(w1, x_ref[b], preferred_element_type=jnp.float32)
        g1 = _gelu_exact(h1 * scale1 + shift1)
        h2 = jnp.dot(w2, g1, preferred_element_type=jnp.float32)
        o_ref[b] = _gelu_exact(h2 * scale2 + shift2).astype(o_ref.dtype)


def _choose_tiling(B, Cin, Cout, HW, budget):
    """Pick (batch block, pixel tile, padded HW) under the VMEM budget."""
    hwp = ((HW + 127) // 128) * 128
    # Rough f32 VMEM bytes per (batch, pixel) column resident per grid step:
    # double-buffered x + y blocks plus single-buffered h1/g1/h2 intermediates.
    col_bytes = 4 * (2 * (Cin + Cout) + Cin + 3 * Cout)
    max_cols = max(128, (budget // 2) // col_bytes)

    n128 = hwp // 128
    best = 1
    for d in range(1, n128 + 1):                 # largest divisor of hwp/128
        if n128 % d == 0 and 128 * d <= max_cols:
            best = d
    tile = 128 * best

    bt = 1
    for cand in range(1, min(B, _MAX_UNROLL_BT) + 1):
        if B % cand == 0 and cand * tile <= max_cols:
            bt = cand
    return bt, tile, hwp


# --------------------------- wrapper ---------------------------------------
def conv_att_block(x_nchw, w1, b1, w2, b2, gamma, beta):
    """ConvAttBlock forward (kernelsize=1, stride=1).

    x_nchw : [B, Cin, H, W]
    w1     : [Cout, Cin]   (== conv1.weight[:, :, 0, 0])
    b1     : [Cout]        (unused: exactly cancelled by training-mode BN)
    w2     : [Cout, Cout]  (== conv2.weight[:, :, 0, 0])
    b2     : [Cout]        (unused: exactly cancelled by training-mode BN)
    gamma, beta : [Cout]   shared BatchNorm2d affine parameters
    returns: [B, Cout, H, W] float32
    """
    del b1, b2  # mean subtraction of training-mode BN cancels the conv bias exactly
    B, Cin, H, W = x_nchw.shape
    Cout = w1.shape[0]
    HW = H * W
    inv_n = 1.0 / float(B * HW)
    budget = _vmem_budget_bytes()

    # NCHW -> [B, C, H*W]: pure reshape (no HBM transpose).  Pixels land on the
    # 128-lane axis inside the kernels, so layout is lane-dense for any C.
    x3d = x_nchw.reshape(B, Cin, HW).astype(jnp.float32)
    # TODO(synk): keep weights/activations in bf16 (preferred_element_type=f32)
    # once channel counts reach >=128 and the caller can supply bf16 inputs.
    w1f = w1.astype(jnp.float32)
    w2f = w2.astype(jnp.float32)
    gamma2d = gamma.reshape(Cout, 1).astype(jnp.float32)
    beta2d = beta.reshape(Cout, 1).astype(jnp.float32)

    # ---------------- fused single-call path --------------------------------
    fused_bytes = 4 * (B * HW * (Cin + Cout)            # x + y
                       + 3 * HW * Cout                  # per-image h1/g1/h2
                       + Cout * (Cin + Cout + 4))       # weights + params
    if B <= _MAX_FUSED_B and 3 * fused_bytes <= budget:
        y3d = pl.pallas_call(
            _make_fused_kernel(inv_n),
            grid=(1,),
            in_specs=[pl.BlockSpec((B, Cin, HW), lambda i: (0, 0, 0)),
                      pl.BlockSpec((Cout, Cin), lambda i: (0, 0)),
                      pl.BlockSpec((Cout, Cout), lambda i: (0, 0)),
                      pl.BlockSpec((Cout, 1), lambda i: (0, 0)),
                      pl.BlockSpec((Cout, 1), lambda i: (0, 0))],
            out_specs=pl.BlockSpec((B, Cout, HW), lambda i: (0, 0, 0)),
            out_shape=jax.ShapeDtypeStruct((B, Cout, HW), jnp.float32),
            compiler_params=pltpu.CompilerParams(
                dimension_semantics=("arbitrary",),
                vmem_limit_bytes=budget),
        )(x3d, w1f, w2f, gamma2d, beta2d)
        return y3d.reshape(B, Cout, H, W)

    # ---------------- tiled 3-pass path --------------------------------------
    bt, tile, hwp = _choose_tiling(B, Cin, Cout, HW, budget)
    need_pad = hwp != HW
    if need_pad:
        x3d = jnp.pad(x3d, ((0, 0), (0, 0), (0, hwp - HW)))
    nb = B // bt
    grid = (nb, hwp // tile)

    x_spec = pl.BlockSpec((bt, Cin, tile), lambda b, t: (b, 0, t))
    out_spec = pl.BlockSpec((bt, Cout, tile), lambda b, t: (b, 0, t))
    w1_spec = pl.BlockSpec((Cout, Cin), lambda b, t: (0, 0))        # resident
    w2_spec = pl.BlockSpec((Cout, Cout), lambda b, t: (0, 0))       # resident
    chan_in = pl.BlockSpec((Cout, 1), lambda b, t: (0, 0))          # resident params
    stat_out = pl.BlockSpec((None, Cout, 1), lambda b, t: (b, 0, 0))  # per-batch-block partials
    stat_shape = jax.ShapeDtypeStruct((nb, Cout, 1), jnp.float32)

    # Per-batch-block partial stats let the batch axis be "parallel" (megacore
    # on v7x); the pixel axis revisits its accumulator -> "arbitrary".
    stats_params = pltpu.CompilerParams(
        dimension_semantics=("parallel", "arbitrary"),
        vmem_limit_bytes=budget)
    final_params = pltpu.CompilerParams(
        dimension_semantics=("parallel", "parallel"),
        vmem_limit_bytes=budget)

    # ---- pass A: per-channel stats of h1 = conv1(x) -------------------------
    s1, q1 = pl.pallas_call(
        _stats1_kernel,
        grid=grid,
        in_specs=[x_spec, w1_spec],
        out_specs=(stat_out, stat_out),
        out_shape=(stat_shape, stat_shape),
        compiler_params=stats_params,
    )(x3d, w1f)
    scale1, shift1 = _fold_bn(s1.sum(axis=0), q1.sum(axis=0),
                              gamma2d, beta2d, inv_n)

    # ---- pass B: per-channel stats of h2 = conv2(gelu(bn1(h1))) -------------
    s2, q2 = pl.pallas_call(
        _make_stats2_kernel(HW, tile, need_pad),
        grid=grid,
        in_specs=[x_spec, w1_spec, w2_spec, chan_in, chan_in],
        out_specs=(stat_out, stat_out),
        out_shape=(stat_shape, stat_shape),
        compiler_params=stats_params,
    )(x3d, w1f, w2f, scale1, shift1)
    scale2, shift2 = _fold_bn(s2.sum(axis=0), q2.sum(axis=0),
                              gamma2d, beta2d, inv_n)

    # ---- pass C: recompute cheap convs + folded BN + GELU, write output -----
    y3d = pl.pallas_call(
        _final_kernel,
        grid=grid,
        in_specs=[x_spec, w1_spec, w2_spec, chan_in, chan_in, chan_in, chan_in],
        out_specs=out_spec,
        out_shape=jax.ShapeDtypeStruct((B, Cout, hwp), jnp.float32),
        compiler_params=final_params,
    )(x3d, w1f, w2f, scale1, shift1, scale2, shift2)

    if need_pad:
        y3d = y3d[:, :, :HW]
    return y3d.reshape(B, Cout, H, W)


# --------------------------- reference & test -------------------------------
def _reference(x, w1, b1, w2, b2, gamma, beta, eps=_BN_EPS):
    """Pure-JAX replica of the PyTorch module (biases included)."""
    def bn(h):
        mean = h.mean(axis=(0, 2, 3), keepdims=True)
        var = h.var(axis=(0, 2, 3), keepdims=True)   # biased, as BN normalize uses
        g = gamma.reshape(1, -1, 1, 1)
        b = beta.reshape(1, -1, 1, 1)
        return (h - mean) * jax.lax.rsqrt(var + eps) * g + b

    h = jnp.einsum("oc,bchw->bohw", w1, x) + b1.reshape(1, -1, 1, 1)
    h = _gelu_exact(bn(h))
    h = jnp.einsum("oc,bchw->bohw", w2, h) + b2.reshape(1, -1, 1, 1)
    return _gelu_exact(bn(h))


if __name__ == "__main__":
    key = jax.random.PRNGKey(0)
    B, Cin, Cout, H, W = 2, 4, 8, 16, 16
    k_x, k_w1, k_b1, k_w2, k_b2 = jax.random.split(key, 5)

    x = jax.random.normal(k_x, (B, Cin, H, W), dtype=jnp.float32)

    # Deterministic PyTorch-like fan-in uniform init.
    bound1 = 1.0 / (Cin ** 0.5)
    w1 = jax.random.uniform(k_w1, (Cout, Cin), jnp.float32, -bound1, bound1)
    b1 = jax.random.uniform(k_b1, (Cout,), jnp.float32, -bound1, bound1)
    bound2 = 1.0 / (Cout ** 0.5)
    w2 = jax.random.uniform(k_w2, (Cout, Cout), jnp.float32, -bound2, bound2)
    b2 = jax.random.uniform(k_b2, (Cout,), jnp.float32, -bound2, bound2)

    gamma = jnp.ones((Cout,), jnp.float32)   # BatchNorm2d default init
    beta = jnp.zeros((Cout,), jnp.float32)

    fwd = jax.jit(conv_att_block)
    out = fwd(x, w1, b1, w2, b2, gamma, beta)
    jax.block_until_ready(out)
    assert out.shape == (B, Cout, H, W)

    ref = _reference(x, w1, b1, w2, b2, gamma, beta)
    max_err = float(jnp.max(jnp.abs(out - ref)))
    assert jnp.allclose(out, ref, atol=1e-4, rtol=1e-4), max_err
    print("KERNEL_OK")
</pallas_src>

<mosaic_0001>
module attributes {stable_mosaic.version = 11 : i64} {
  func.func @kernel(%arg0: i32, %arg1: memref<2x4x256xf32, #tpu.memory_space<vmem>>, %arg2: memref<8x4xf32, #tpu.memory_space<vmem>>, %arg3: memref<8x8xf32, #tpu.memory_space<vmem>>, %arg4: memref<8x1xf32, #tpu.memory_space<vmem>>, %arg5: memref<8x1xf32, #tpu.memory_space<vmem>>, %arg6: memref<2x8x256xf32, #tpu.memory_space<vmem>>) attributes {dimension_semantics = [#tpu.dimension_semantics<arbitrary>], iteration_bounds = array<i64: 1>, scalar_prefetch = 0 : i64, scratch_operands = 0 : i64, tpu.core_type = #tpu.core_type<tc>, window_params = [{pipeline_mode = #tpu.pipeline_mode<synchronous>, transform_indices = @transform_0, window_bounds = array<i64: 2, 4, 256>}, {pipeline_mode = #tpu.pipeline_mode<synchronous>, transform_indices = @transform_1, window_bounds = array<i64: 8, 4>}, {pipeline_mode = #tpu.pipeline_mode<synchronous>, transform_indices = @transform_2, window_bounds = array<i64: 8, 8>}, {pipeline_mode = #tpu.pipeline_mode<synchronous>, transform_indices = @transform_3, window_bounds = array<i64: 8, 1>}, {pipeline_mode = #tpu.pipeline_mode<synchronous>, transform_indices = @transform_4, window_bounds = array<i64: 8, 1>}, {pipeline_mode = #tpu.pipeline_mode<synchronous>, transform_indices = @transform_5, window_bounds = array<i64: 2, 8, 256>}]} {
    %c0 = arith.constant 0 : index
    %c0_0 = arith.constant 0 : index
    %0 = vector.load %arg2[%c0, %c0_0] : memref<8x4xf32, #tpu.memory_space<vmem>>, vector<8x4xf32>
    %c0_1 = arith.constant 0 : index
    %c0_2 = arith.constant 0 : index
    %1 = vector.load %arg3[%c0_1, %c0_2] : memref<8x8xf32, #tpu.memory_space<vmem>>, vector<8x8xf32>
    %c0_3 = arith.constant 0 : index
    %c0_4 = arith.constant 0 : index
    %2 = vector.load %arg4[%c0_3, %c0_4] : memref<8x1xf32, #tpu.memory_space<vmem>>, vector<8x1xf32>
    %c0_5 = arith.constant 0 : index
    %c0_6 = arith.constant 0 : index
    %3 = vector.load %arg5[%c0_5, %c0_6] : memref<8x1xf32, #tpu.memory_space<vmem>>, vector<8x1xf32>
    %cst = arith.constant 0.000000e+00 : f32
    %4 = vector.broadcast %cst : f32 to vector<8x1xf32>
    %cst_7 = arith.constant 0.000000e+00 : f32
    %5 = vector.broadcast %cst_7 : f32 to vector<8x1xf32>
    %c0_8 = arith.constant 0 : index
    %c0_9 = arith.constant 0 : index
    %c0_10 = arith.constant 0 : index
    %6 = vector.load %arg1[%c0_8, %c0_9, %c0_10] : memref<2x4x256xf32, #tpu.memory_space<vmem>>, vector<1x4x256xf32>
    %7 = vector.shape_cast %6 : vector<1x4x256xf32> to vector<4x256xf32>
    %cst_11 = arith.constant dense<0.000000e+00> : vector<8x256xf32>
    %8 = tpu.matmul %0, %7, %cst_11 {dimension_numbers = #tpu.dot_dimension_numbers<[1], [0], [0], [1], [0, 0, 1, 1], [], []>} : vector<8x4xf32>, vector<4x256xf32>, vector<8x256xf32> -> vector<8x256xf32>
    %cst_12 = arith.constant dense<0.000000e+00> : vector<8xf32>
    %9 = vector.multi_reduction <add>, %8, %cst_12 [1] : vector<8x256xf32> to vector<8xf32>
    %10 = vector.shape_cast %9 : vector<8xf32> to vector<8x1xf32>
    %11 = arith.addf %4, %10 : vector<8x1xf32>
    %12 = arith.mulf %8, %8 : vector<8x256xf32>
    %cst_13 = arith.constant dense<0.000000e+00> : vector<8xf32>
    %13 = vector.multi_reduction <add>, %12, %cst_13 [1] : vector<8x256xf32> to vector<8xf32>
    %14 = vector.shape_cast %13 : vector<8xf32> to vector<8x1xf32>
    %15 = arith.addf %5, %14 : vector<8x1xf32>
    %c1 = arith.constant 1 : index
    %c0_14 = arith.constant 0 : index
    %c0_15 = arith.constant 0 : index
    %16 = vector.load %arg1[%c1, %c0_14, %c0_15] : memref<2x4x256xf32, #tpu.memory_space<vmem>>, vector<1x4x256xf32>
    %17 = vector.shape_cast %16 : vector<1x4x256xf32> to vector<4x256xf32>
    %cst_16 = arith.constant dense<0.000000e+00> : vector<8x256xf32>
    %18 = tpu.matmul %0, %17, %cst_16 {dimension_numbers = #tpu.dot_dimension_numbers<[1], [0], [0], [1], [0, 0, 1, 1], [], []>} : vector<8x4xf32>, vector<4x256xf32>, vector<8x256xf32> -> vector<8x256xf32>
    %cst_17 = arith.constant dense<0.000000e+00> : vector<8xf32>
    %19 = vector.multi_reduction <add>, %18, %cst_17 [1] : vector<8x256xf32> to vector<8xf32>
    %20 = vector.shape_cast %19 : vector<8xf32> to vector<8x1xf32>
    %21 = arith.addf %11, %20 : vector<8x1xf32>
    %22 = arith.mulf %18, %18 : vector<8x256xf32>
    %cst_18 = arith.constant dense<0.000000e+00> : vector<8xf32>
    %23 = vector.multi_reduction <add>, %22, %cst_18 [1] : vector<8x256xf32> to vector<8xf32>
    %24 = vector.shape_cast %23 : vector<8xf32> to vector<8x1xf32>
    %25 = arith.addf %15, %24 : vector<8x1xf32>
    %cst_19 = arith.constant 0.001953125 : f32
    %26 = vector.broadcast %cst_19 : f32 to vector<8x1xf32>
    %27 = arith.mulf %21, %26 : vector<8x1xf32>
    %cst_20 = arith.constant 0.001953125 : f32
    %28 = vector.broadcast %cst_20 : f32 to vector<8x1xf32>
    %29 = arith.mulf %25, %28 : vector<8x1xf32>
    %30 = arith.mulf %27, %27 : vector<8x1xf32>
    %31 = arith.subf %29, %30 : vector<8x1xf32>
    %cst_21 = arith.constant 0.000000e+00 : f32
    %32 = vector.broadcast %cst_21 : f32 to vector<8x1xf32>
    %33 = arith.maximumf %31, %32 : vector<8x1xf32>
    %cst_22 = arith.constant 9.99999974E-6 : f32
    %34 = vector.broadcast %cst_22 : f32 to vector<8x1xf32>
    %35 = arith.addf %33, %34 : vector<8x1xf32>
    %36 = math.rsqrt %35 : vector<8x1xf32>
    %37 = arith.mulf %2, %36 : vector<8x1xf32>
    %38 = arith.mulf %27, %37 : vector<8x1xf32>
    %39 = arith.subf %3, %38 : vector<8x1xf32>
    %cst_23 = arith.constant 0.000000e+00 : f32
    %40 = vector.broadcast %cst_23 : f32 to vector<8x1xf32>
    %cst_24 = arith.constant 0.000000e+00 : f32
    %41 = vector.broadcast %cst_24 : f32 to vector<8x1xf32>
    %c0_25 = arith.constant 0 : index
    %c0_26 = arith.constant 0 : index
    %c0_27 = arith.constant 0 : index
    %42 = vector.load %arg1[%c0_25, %c0_26, %c0_27] : memref<2x4x256xf32, #tpu.memory_space<vmem>>, vector<1x4x256xf32>
    %43 = vector.shape_cast %42 : vector<1x4x256xf32> to vector<4x256xf32>
    %cst_28 = arith.constant dense<0.000000e+00> : vector<8x256xf32>
    %44 = tpu.matmul %0, %43, %cst_28 {dimension_numbers = #tpu.dot_dimension_numbers<[1], [0], [0], [1], [0, 0, 1, 1], [], []>} : vector<8x4xf32>, vector<4x256xf32>, vector<8x256xf32> -> vector<8x256xf32>
    %45 = vector.broadcast %37 : vector<8x1xf32> to vector<8x256xf32>
    %46 = arith.mulf %44, %45 : vector<8x256xf32>
    %47 = vector.broadcast %39 : vector<8x1xf32> to vector<8x256xf32>
    %48 = arith.addf %46, %47 : vector<8x256xf32>
    %cst_29 = arith.constant 5.000000e-01 : f32
    %49 = vector.broadcast %cst_29 : f32 to vector<8x256xf32>
    %50 = arith.mulf %49, %48 : vector<8x256xf32>
    %cst_30 = arith.constant 0.707106769 : f32
    %51 = vector.broadcast %cst_30 : f32 to vector<8x256xf32>
    %52 = arith.mulf %48, %51 : vector<8x256xf32>
    %53 = math.erf %52 : vector<8x256xf32>
    %cst_31 = arith.constant 1.000000e+00 : f32
    %54 = vector.broadcast %cst_31 : f32 to vector<8x256xf32>
    %55 = arith.addf %54, %53 : vector<8x256xf32>
    %56 = arith.mulf %50, %55 : vector<8x256xf32>
    %cst_32 = arith.constant dense<0.000000e+00> : vector<8x256xf32>
    %57 = tpu.matmul %1, %56, %cst_32 {dimension_numbers = #tpu.dot_dimension_numbers<[1], [0], [0], [1], [0, 0, 1, 1], [], []>} : vector<8x8xf32>, vector<8x256xf32>, vector<8x256xf32> -> vector<8x256xf32>
    %cst_33 = arith.constant dense<0.000000e+00> : vector<8xf32>
    %58 = vector.multi_reduction <add>, %57, %cst_33 [1] : vector<8x256xf32> to vector<8xf32>
    %59 = vector.shape_cast %58 : vector<8xf32> to vector<8x1xf32>
    %60 = arith.addf %40, %59 : vector<8x1xf32>
    %61 = arith.mulf %57, %57 : vector<8x256xf32>
    %cst_34 = arith.constant dense<0.000000e+00> : vector<8xf32>
    %62 = vector.multi_reduction <add>, %61, %cst_34 [1] : vector<8x256xf32> to vector<8xf32>
    %63 = vector.shape_cast %62 : vector<8xf32> to vector<8x1xf32>
    %64 = arith.addf %41, %63 : vector<8x1xf32>
    %c1_35 = arith.constant 1 : index
    %c0_36 = arith.constant 0 : index
    %c0_37 = arith.constant 0 : index
    %65 = vector.load %arg1[%c1_35, %c0_36, %c0_37] : memref<2x4x256xf32, #tpu.memory_space<vmem>>, vector<1x4x256xf32>
    %66 = vector.shape_cast %65 : vector<1x4x256xf32> to vector<4x256xf32>
    %cst_38 = arith.constant dense<0.000000e+00> : vector<8x256xf32>
    %67 = tpu.matmul %0, %66, %cst_38 {dimension_numbers = #tpu.dot_dimension_numbers<[1], [0], [0], [1], [0, 0, 1, 1], [], []>} : vector<8x4xf32>, vector<4x256xf32>, vector<8x256xf32> -> vector<8x256xf32>
    %68 = vector.broadcast %37 : vector<8x1xf32> to vector<8x256xf32>
    %69 = arith.mulf %67, %68 : vector<8x256xf32>
    %70 = vector.broadcast %39 : vector<8x1xf32> to vector<8x256xf32>
    %71 = arith.addf %69, %70 : vector<8x256xf32>
    %cst_39 = arith.constant 5.000000e-01 : f32
    %72 = vector.broadcast %cst_39 : f32 to vector<8x256xf32>
    %73 = arith.mulf %72, %71 : vector<8x256xf32>
    %cst_40 = arith.constant 0.707106769 : f32
    %74 = vector.broadcast %cst_40 : f32 to vector<8x256xf32>
    %75 = arith.mulf %71, %74 : vector<8x256xf32>
    %76 = math.erf %75 : vector<8x256xf32>
    %cst_41 = arith.constant 1.000000e+00 : f32
    %77 = vector.broadcast %cst_41 : f32 to vector<8x256xf32>
    %78 = arith.addf %77, %76 : vector<8x256xf32>
    %79 = arith.mulf %73, %78 : vector<8x256xf32>
    %cst_42 = arith.constant dense<0.000000e+00> : vector<8x256xf32>
    %80 = tpu.matmul %1, %79, %cst_42 {dimension_numbers = #tpu.dot_dimension_numbers<[1], [0], [0], [1], [0, 0, 1, 1], [], []>} : vector<8x8xf32>, vector<8x256xf32>, vector<8x256xf32> -> vector<8x256xf32>
    %cst_43 = arith.constant dense<0.000000e+00> : vector<8xf32>
    %81 = vector.multi_reduction <add>, %80, %cst_43 [1] : vector<8x256xf32> to vector<8xf32>
    %82 = vector.shape_cast %81 : vector<8xf32> to vector<8x1xf32>
    %83 = arith.addf %60, %82 : vector<8x1xf32>
    %84 = arith.mulf %80, %80 : vector<8x256xf32>
    %cst_44 = arith.constant dense<0.000000e+00> : vector<8xf32>
    %85 = vector.multi_reduction <add>, %84, %cst_44 [1] : vector<8x256xf32> to vector<8xf32>
    %86 = vector.shape_cast %85 : vector<8xf32> to vector<8x1xf32>
    %87 = arith.addf %64, %86 : vector<8x1xf32>
    %cst_45 = arith.constant 0.001953125 : f32
    %88 = vector.broadcast %cst_45 : f32 to vector<8x1xf32>
    %89 = arith.mulf %83, %88 : vector<8x1xf32>
    %cst_46 = arith.constant 0.001953125 : f32
    %90 = vector.broadcast %cst_46 : f32 to vector<8x1xf32>
    %91 = arith.mulf %87, %90 : vector<8x1xf32>
    %92 = arith.mulf %89, %89 : vector<8x1xf32>
    %93 = arith.subf %91, %92 : vector<8x1xf32>
    %cst_47 = arith.constant 0.000000e+00 : f32
    %94 = vector.broadcast %cst_47 : f32 to vector<8x1xf32>
    %95 = arith.maximumf %93, %94 : vector<8x1xf32>
    %cst_48 = arith.constant 9.99999974E-6 : f32
    %96 = vector.broadcast %cst_48 : f32 to vector<8x1xf32>
    %97 = arith.addf %95, %96 : vector<8x1xf32>
    %98 = math.rsqrt %97 : vector<8x1xf32>
    %99 = arith.mulf %2, %98 : vector<8x1xf32>
    %100 = arith.mulf %89, %99 : vector<8x1xf32>
    %101 = arith.subf %3, %100 : vector<8x1xf32>
    %c0_49 = arith.constant 0 : index
    %c0_50 = arith.constant 0 : index
    %c0_51 = arith.constant 0 : index
    %102 = vector.load %arg1[%c0_49, %c0_50, %c0_51] : memref<2x4x256xf32, #tpu.memory_space<vmem>>, vector<1x4x256xf32>
    %103 = vector.shape_cast %102 : vector<1x4x256xf32> to vector<4x256xf32>
    %cst_52 = arith.constant dense<0.000000e+00> : vector<8x256xf32>
    %104 = tpu.matmul %0, %103, %cst_52 {dimension_numbers = #tpu.dot_dimension_numbers<[1], [0], [0], [1], [0, 0, 1, 1], [], []>} : vector<8x4xf32>, vector<4x256xf32>, vector<8x256xf32> -> vector<8x256xf32>
    %105 = vector.broadcast %37 : vector<8x1xf32> to vector<8x256xf32>
    %106 = arith.mulf %104, %105 : vector<8x256xf32>
    %107 = vector.broadcast %39 : vector<8x1xf32> to vector<8x256xf32>
    %108 = arith.addf %106, %107 : vector<8x256xf32>
    %cst_53 = arith.constant 5.000000e-01 : f32
    %109 = vector.broadcast %cst_53 : f32 to vector<8x256xf32>
    %110 = arith.mulf %109, %108 : vector<8x256xf32>
    %cst_54 = arith.constant 0.707106769 : f32
    %111 = vector.broadcast %cst_54 : f32 to vector<8x256xf32>
    %112 = arith.mulf %108, %111 : vector<8x256xf32>
    %113 = math.erf %112 : vector<8x256xf32>
    %cst_55 = arith.constant 1.000000e+00 : f32
    %114 = vector.broadcast %cst_55 : f32 to vector<8x256xf32>
    %115 = arith.addf %114, %113 : vector<8x256xf32>
    %116 = arith.mulf %110, %115 : vector<8x256xf32>
    %cst_56 = arith.constant dense<0.000000e+00> : vector<8x256xf32>
    %117 = tpu.matmul %1, %116, %cst_56 {dimension_numbers = #tpu.dot_dimension_numbers<[1], [0], [0], [1], [0, 0, 1, 1], [], []>} : vector<8x8xf32>, vector<8x256xf32>, vector<8x256xf32> -> vector<8x256xf32>
    %118 = vector.broadcast %99 : vector<8x1xf32> to vector<8x256xf32>
    %119 = arith.mulf %117, %118 : vector<8x256xf32>
    %120 = vector.broadcast %101 : vector<8x1xf32> to vector<8x256xf32>
    %121 = arith.addf %119, %120 : vector<8x256xf32>
    %cst_57 = arith.constant 5.000000e-01 : f32
    %122 = vector.broadcast %cst_57 : f32 to vector<8x256xf32>
    %123 = arith.mulf %122, %121 : vector<8x256xf32>
    %cst_58 = arith.constant 0.707106769 : f32
    %124 = vector.broadcast %cst_58 : f32 to vector<8x256xf32>
    %125 = arith.mulf %121, %124 : vector<8x256xf32>
    %126 = math.erf %125 : vector<8x256xf32>
    %cst_59 = arith.constant 1.000000e+00 : f32
    %127 = vector.broadcast %cst_59 : f32 to vector<8x256xf32>
    %128 = arith.addf %127, %126 : vector<8x256xf32>
    %129 = arith.mulf %123, %128 : vector<8x256xf32>
    %c0_60 = arith.constant 0 : index
    %c0_61 = arith.constant 0 : index
    %c0_62 = arith.constant 0 : index
    %130 = vector.load %arg6[%c0_60, %c0_61, %c0_62] : memref<2x8x256xf32, #tpu.memory_space<vmem>>, vector<1x8x256xf32>
    %131 = vector.shape_cast %130 : vector<1x8x256xf32> to vector<8x256xf32>
    %132 = vector.shape_cast %129 : vector<8x256xf32> to vector<1x8x256xf32>
    tpu.vector_store %arg6[%c0_60, %c0_61, %c0_62], %132 {strides = array<i32>} : memref<2x8x256xf32, #tpu.memory_space<vmem>>, vector<1x8x256xf32>,
    %c1_63 = arith.constant 1 : index
    %c0_64 = arith.constant 0 : index
    %c0_65 = arith.constant 0 : index
    %133 = vector.load %arg1[%c1_63, %c0_64, %c0_65] : memref<2x4x256xf32, #tpu.memory_space<vmem>>, vector<1x4x256xf32>
    %134 = vector.shape_cast %133 : vector<1x4x256xf32> to vector<4x256xf32>
    %cst_66 = arith.constant dense<0.000000e+00> : vector<8x256xf32>
    %135 = tpu.matmul %0, %134, %cst_66 {dimension_numbers = #tpu.dot_dimension_numbers<[1], [0], [0], [1], [0, 0, 1, 1], [], []>} : vector<8x4xf32>, vector<4x256xf32>, vector<8x256xf32> -> vector<8x256xf32>
    %136 = vector.broadcast %37 : vector<8x1xf32> to vector<8x256xf32>
    %137 = arith.mulf %135, %136 : vector<8x256xf32>
    %138 = vector.broadcast %39 : vector<8x1xf32> to vector<8x256xf32>
    %139 = arith.addf %137, %138 : vector<8x256xf32>
    %cst_67 = arith.constant 5.000000e-01 : f32
    %140 = vector.broadcast %cst_67 : f32 to vector<8x256xf32>
    %141 = arith.mulf %140, %139 : vector<8x256xf32>
    %cst_68 = arith.constant 0.707106769 : f32
    %142 = vector.broadcast %cst_68 : f32 to vector<8x256xf32>
    %143 = arith.mulf %139, %142 : vector<8x256xf32>
    %144 = math.erf %143 : vector<8x256xf32>
    %cst_69 = arith.constant 1.000000e+00 : f32
    %145 = vector.broadcast %cst_69 : f32 to vector<8x256xf32>
    %146 = arith.addf %145, %144 : vector<8x256xf32>
    %147 = arith.mulf %141, %146 : vector<8x256xf32>
    %cst_70 = arith.constant dense<0.000000e+00> : vector<8x256xf32>
    %148 = tpu.matmul %1, %147, %cst_70 {dimension_numbers = #tpu.dot_dimension_numbers<[1], [0], [0], [1], [0, 0, 1, 1], [], []>} : vector<8x8xf32>, vector<8x256xf32>, vector<8x256xf32> -> vector<8x256xf32>
    %149 = vector.broadcast %99 : vector<8x1xf32> to vector<8x256xf32>
    %150 = arith.mulf %148, %149 : vector<8x256xf32>
    %151 = vector.broadcast %101 : vector<8x1xf32> to vector<8x256xf32>
    %152 = arith.addf %150, %151 : vector<8x256xf32>
    %cst_71 = arith.constant 5.000000e-01 : f32
    %153 = vector.broadcast %cst_71 : f32 to vector<8x256xf32>
    %154 = arith.mulf %153, %152 : vector<8x256xf32>
    %cst_72 = arith.constant 0.707106769 : f32
    %155 = vector.broadcast %cst_72 : f32 to vector<8x256xf32>
    %156 = arith.mulf %152, %155 : vector<8x256xf32>
    %157 = math.erf %156 : vector<8x256xf32>
    %cst_73 = arith.constant 1.000000e+00 : f32
    %158 = vector.broadcast %cst_73 : f32 to vector<8x256xf32>
    %159 = arith.addf %158, %157 : vector<8x256xf32>
    %160 = arith.mulf %154, %159 : vector<8x256xf32>
    %c1_74 = arith.constant 1 : index
    %c0_75 = arith.constant 0 : index
    %c0_76 = arith.constant 0 : index
    %161 = vector.load %arg6[%c1_74, %c0_75, %c0_76] : memref<2x8x256xf32, #tpu.memory_space<vmem>>, vector<1x8x256xf32>
    %162 = vector.shape_cast %161 : vector<1x8x256xf32> to vector<8x256xf32>
    %163 = vector.shape_cast %160 : vector<8x256xf32> to vector<1x8x256xf32>
    tpu.vector_store %arg6[%c1_74, %c0_75, %c0_76], %163 {strides = array<i32>} : memref<2x8x256xf32, #tpu.memory_space<vmem>>, vector<1x8x256xf32>,
    return
  }
  func.func @transform_0(%arg0: i32) -> (i32, i32, i32) {
    %c0_i32 = arith.constant 0 : i32
    %c0_i32_0 = arith.constant 0 : i32
    %c0_i32_1 = arith.constant 0 : i32
    %c0_i32_2 = arith.constant 0 : i32
    return %c0_i32, %c0_i32_0, %c0_i32_1 : i32, i32, i32
  }
  func.func @transform_1(%arg0: i32) -> (i32, i32) {
    %c0_i32 = arith.constant 0 : i32
    %c0_i32_0 = arith.constant 0 : i32
    %c0_i32_1 = arith.constant 0 : i32
    return %c0_i32, %c0_i32_0 : i32, i32
  }
  func.func @transform_2(%arg0: i32) -> (i32, i32) {
    %c0_i32 = arith.constant 0 : i32
    %c0_i32_0 = arith.constant 0 : i32
    %c0_i32_1 = arith.constant 0 : i32
    return %c0_i32, %c0_i32_0 : i32, i32
  }
  func.func @transform_3(%arg0: i32) -> (i32, i32) {
    %c0_i32 = arith.constant 0 : i32
    %c0_i32_0 = arith.constant 0 : i32
    %c0_i32_1 = arith.constant 0 : i32
    return %c0_i32, %c0_i32_0 : i32, i32
  }
  func.func @transform_4(%arg0: i32) -> (i32, i32) {
    %c0_i32 = arith.constant 0 : i32
    %c0_i32_0 = arith.constant 0 : i32
    %c0_i32_1 = arith.constant 0 : i32
    return %c0_i32, %c0_i32_0 : i32, i32
  }
  func.func @transform_5(%arg0: i32) -> (i32, i32, i32) {
    %c0_i32 = arith.constant 0 : i32
    %c0_i32_0 = arith.constant 0 : i32
    %c0_i32_1 = arith.constant 0 : i32
    %c0_i32_2 = arith.constant 0 : i32
    return %c0_i32, %c0_i32_0, %c0_i32_1 : i32, i32, i32
  }
}

</mosaic_0001>

<llo_original>
// kernel: conv_att_block.1
$region0: #{conv_att_block.1}
  #allocation0 [shape = 'u32[]', space=smem, size = 0x4, offset = 0x4, fixed_abs, tag = 'smem constant byte address 0x4 - core index']
  #allocation1 [shape = 'u32[144,128]{1,0:T(1,128)}', space=vmem, size = 0x12000, scoped, tag = 'internal scratch']
  %s0 = inlined_call_operand.vmem [shape: f32[2,4,256], index: 0, kind: input, shape index: {}]
  %s1 = inlined_call_operand.vmem [shape: f32[8,4], index: 1, kind: input, shape index: {}]
  %s2 = inlined_call_operand.vmem [shape: f32[8,8], index: 2, kind: input, shape index: {}]
  %s3 = inlined_call_operand.vmem [shape: f32[8,1], index: 3, kind: input, shape index: {}]
  %s4 = inlined_call_operand.vmem [shape: f32[8,1], index: 4, kind: input, shape index: {}]
  %s5 = inlined_call_operand.vmem [shape: f32[2,8,256], index: 5, kind: output, shape index: {}]
  %s6 = sld [smem:[#allocation0]]
  $region30: #{conv_att_block.1} parent=0
    _
  %s8 = ssub.s32 1, %s6
  %s9 = scalar_select 0, %s8, %s6
  // Predicated region
  $region2: #{conv_att_block.1} parent=0 // pred_check
    _
  $region3: #{conv_att_block.1} parent=0 // pred_check_branch
    %11 = sbr.rel (0) target = $region5
  $region4: #{conv_att_block.1} parent=0 // pred_region
    _
  $region5: #{conv_att_block.1} parent=0 // pred_fallthru
    _
  // Predicated region
  $region6: #{conv_att_block.1} parent=0 // pred_check
    _
  $region7: #{conv_att_block.1} parent=0 // pred_check_branch
    %13 = sbr.rel (0) target = $region9
  $region8: #{conv_att_block.1} parent=0 // pred_region
    _
  $region9: #{conv_att_block.1} parent=0 // pred_fallthru
    _
  // Predicated region
  $region10: #{conv_att_block.1} parent=0 // pred_check
    _
  $region11: #{conv_att_block.1} parent=0 // pred_check_branch
    %15 = sbr.rel (0) target = $region13
  $region12: #{conv_att_block.1} parent=0 // pred_region
    _
  $region13: #{conv_att_block.1} parent=0 // pred_fallthru
    _
  // Predicated region
  $region14: #{conv_att_block.1} parent=0 // pred_check
    _
  $region15: #{conv_att_block.1} parent=0 // pred_check_branch
    %17 = sbr.rel (0) target = $region17
  $region16: #{conv_att_block.1} parent=0 // pred_region
    _
  $region17: #{conv_att_block.1} parent=0 // pred_fallthru
    _
  // Predicated region
  $region18: #{conv_att_block.1} parent=0 // pred_check
    _
  $region19: #{conv_att_block.1} parent=0 // pred_check_branch
    %19 = sbr.rel (0) target = $region21
  $region20: #{conv_att_block.1} parent=0 // pred_region
    _
  $region21: #{conv_att_block.1} parent=0 // pred_fallthru
    _
  %v20 = vld [vmem:[%s1] sm:$0xff]
  %v21 = vld [vmem:[%s2] sm:$0xff]
  %v22 = vld [vmem:[%s3] sm:$0xff]
  %v23 = vld [vmem:[%s4] sm:$0xff]
  %v24 = vld [vmem:[%s0] sm:$0xff]
  %v26 = vcombine.high %v24, %v24
  %vm27 = vcmask 31744
  %v29 = vsel %vm27, %v20, 0
  %vm31 = vcmask 1043456
  %v32 = vsel %vm31, %v24, 0
  %v34 = vsel %vm31, %v26, 0
  %36 = vmatprep.subr.mxu0 %v34
  %37 = vmatpush1.msra.mxu0 %v32
  %38 = vmatprep.subr.mxu0 0.0
  %39 = vmatpush1.msra.mxu0 0.0
  %40 = vmatprep.subr.mxu0 0.0
  %41 = vmatpush1.msra.mxu0 0.0
  %42 = vmatprep.subr.mxu0 0.0
  %43 = vmatpush1.msra.mxu0 0.0
  %44 = vmatprep.subr.mxu0 0.0
  %45 = vmatpush1.msra.mxu0 0.0
  %46 = vmatprep.subr.mxu0 0.0
  %47 = vmatpush1.msra.mxu0 0.0
  %48 = vmatprep.subr.mxu0 0.0
  %49 = vmatpush1.msra.mxu0 0.0
  %50 = vmatprep.subr.mxu0 0.0
  %51 = vmatpush1.msra.mxu0 0.0
  %52 = vmatprep.subr.mxu0 0.0
  %53 = vmatpush1.msra.mxu0 0.0
  %54 = vmatprep.subr.mxu0 0.0
  %55 = vmatpush1.msra.mxu0 0.0
  %56 = vmatprep.subr.mxu0 0.0
  %57 = vmatpush1.msra.mxu0 0.0
  %58 = vmatprep.subr.mxu0 0.0
  %59 = vmatpush1.msra.mxu0 0.0
  %60 = vmatprep.subr.mxu0 0.0
  %61 = vmatpush1.msra.mxu0 0.0
  %62 = vmatprep.subr.mxu0 0.0
  %63 = vmatpush1.msra.mxu0 0.0
  %64 = vmatprep.subr.mxu0 0.0
  %65 = vmatpush1.msra.mxu0 0.0
  %66 = vmatprep.subr.mxu0 0.0
  %67 = vmatpush1.msra.mxu0 0.0
  %68 = vmatprep.subr.mxu0 0.0
  %69 = vmatpush1.msra.mxu0 0.0
  %70 = vmatprep.subr.mxu0 0.0
  %71 = vmatpush1.msra.mxu0 0.0
  %72 = vmatprep.subr.mxu0 0.0
  %73 = vmatpush1.msra.mxu0 0.0
  %74 = vmatprep.subr.mxu0 0.0
  %75 = vmatpush1.msra.mxu0 0.0
  %76 = vmatprep.subr.mxu0 0.0
  %77 = vmatpush1.msra.mxu0 0.0
  %78 = vmatprep.subr.mxu0 0.0
  %79 = vmatpush1.msra.mxu0 0.0
  %80 = vmatprep.subr.mxu0 0.0
  %81 = vmatpush1.msra.mxu0 0.0
  %82 = vmatprep.subr.mxu0 0.0
  %83 = vmatpush1.msra.mxu0 0.0
  %84 = vmatprep.subr.mxu0 0.0
  %85 = vmatpush1.msra.mxu0 0.0
  %86 = vmatprep.subr.mxu0 0.0
  %87 = vmatpush1.msra.mxu0 0.0
  %88 = vmatprep.subr.mxu0 0.0
  %89 = vmatpush1.msra.mxu0 0.0
  %90 = vmatprep.subr.mxu0 0.0
  %91 = vmatpush1.msra.mxu0 0.0
  %92 = vmatprep.subr.mxu0 0.0
  %93 = vmatpush1.msra.mxu0 0.0
  %94 = vmatprep.subr.mxu0 0.0
  %95 = vmatpush1.msra.mxu0 0.0
  %96 = vmatprep.subr.mxu0 0.0
  %97 = vmatpush1.msra.mxu0 0.0
  %98 = vmatprep.subr.mxu0 0.0
  %99 = vmatpush1.msra.mxu0 0.0
  %100 = vmatprep.mubr.f32.mxu0 0.0
  %101 = vmatmul.mubr.f32.gmra.mrb[0].mxu0 %v29
  %v102 = vpop.f32.mrb[0].mxu0
  %v103 = vadd.f32 0.0, %v102
  %v104 = vpop.f32.mrb[0].mxu0
  %v105 = vadd.f32 0.0, %v104
  %106 = vdwg.mxu0
  %v107 = vadd.f32 %v103, %v105
  %108 = vadd.xlane.f32.xlu0 %v107
  %v109 = vpop.xlane.xlu0 %108
  %v110 = vadd.f32 %v109, 0.0
  %v111 = vmul.f32 %v103, %v103
  %v112 = vmul.f32 %v105, %v105
  %v113 = vadd.f32 %v111, %v112
  %114 = vadd.xlane.f32.xlu0 %v113
  %v115 = vpop.xlane.xlu0 %114
  %v116 = vadd.f32 %v115, 0.0
  %s117 = scalar_lea.vmem %s0, 8
  %v118 = vld [vmem:[%s117] sm:$0xff]
  %v120 = vcombine.high %v118, %v118
  %v121 = vsel %vm31, %v118, 0
  %v123 = vsel %vm31, %v120, 0
  %125 = vmatprep.subr.mxu0 %v123
  %126 = vmatpush1.msra.mxu0 %v121
  %127 = vmatprep.subr.mxu0 0.0
  %128 = vmatpush1.msra.mxu0 0.0
  %129 = vmatprep.subr.mxu0 0.0
  %130 = vmatpush1.msra.mxu0 0.0
  %131 = vmatprep.subr.mxu0 0.0
  %132 = vmatpush1.msra.mxu0 0.0
  %133 = vmatprep.subr.mxu0 0.0
  %134 = vmatpush1.msra.mxu0 0.0
  %135 = vmatprep.subr.mxu0 0.0
  %136 = vmatpush1.msra.mxu0 0.0
  %137 = vmatprep.subr.mxu0 0.0
  %138 = vmatpush1.msra.mxu0 0.0
  %139 = vmatprep.subr.mxu0 0.0
  %140 = vmatpush1.msra.mxu0 0.0
  %141 = vmatprep.subr.mxu0 0.0
  %142 = vmatpush1.msra.mxu0 0.0
  %143 = vmatprep.subr.mxu0 0.0
  %144 = vmatpush1.msra.mxu0 0.0
  %145 = vmatprep.subr.mxu0 0.0
  %146 = vmatpush1.msra.mxu0 0.0
  %147 = vmatprep.subr.mxu0 0.0
  %148 = vmatpush1.msra.mxu0 0.0
  %149 = vmatprep.subr.mxu0 0.0
  %150 = vmatpush1.msra.mxu0 0.0
  %151 = vmatprep.subr.mxu0 0.0
  %152 = vmatpush1.msra.mxu0 0.0
  %153 = vmatprep.subr.mxu0 0.0
  %154 = vmatpush1.msra.mxu0 0.0
  %155 = vmatprep.subr.mxu0 0.0
  %156 = vmatpush1.msra.mxu0 0.0
  %157 = vmatprep.subr.mxu0 0.0
  %158 = vmatpush1.msra.mxu0 0.0
  %159 = vmatprep.subr.mxu0 0.0
  %160 = vmatpush1.msra.mxu0 0.0
  %161 = vmatprep.subr.mxu0 0.0
  %162 = vmatpush1.msra.mxu0 0.0
  %163 = vmatprep.subr.mxu0 0.0
  %164 = vmatpush1.msra.mxu0 0.0
  %165 = vmatprep.subr.mxu0 0.0
  %166 = vmatpush1.msra.mxu0 0.0
  %167 = vmatprep.subr.mxu0 0.0
  %168 = vmatpush1.msra.mxu0 0.0
  %169 = vmatprep.subr.mxu0 0.0
  %170 = vmatpush1.msra.mxu0 0.0
  %171 = vmatprep.subr.mxu0 0.0
  %172 = vmatpush1.msra.mxu0 0.0
  %173 = vmatprep.subr.mxu0 0.0
  %174 = vmatpush1.msra.mxu0 0.0
  %175 = vmatprep.subr.mxu0 0.0
  %176 = vmatpush1.msra.mxu0 0.0
  %177 = vmatprep.subr.mxu0 0.0
  %178 = vmatpush1.msra.mxu0 0.0
  %179 = vmatprep.subr.mxu0 0.0
  %180 = vmatpush1.msra.mxu0 0.0
  %181 = vmatprep.subr.mxu0 0.0
  %182 = vmatpush1.msra.mxu0 0.0
  %183 = vmatprep.subr.mxu0 0.0
  %184 = vmatpush1.msra.mxu0 0.0
  %185 = vmatprep.subr.mxu0 0.0
  %186 = vmatpush1.msra.mxu0 0.0
  %187 = vmatprep.subr.mxu0 0.0
  %188 = vmatpush1.msra.mxu0 0.0
  %189 = vmatprep.mubr.f32.mxu0 0.0
  %190 = vmatmul.mubr.f32.gmra.mrb[0].mxu0 %v29
  %v191 = vpop.f32.mrb[0].mxu0
  %v192 = vadd.f32 0.0, %v191
  %v193 = vpop.f32.mrb[0].mxu0
  %v194 = vadd.f32 0.0, %v193
  %195 = vdwg.mxu0
  %v196 = vadd.f32 %v192, %v194
  %197 = vadd.xlane.f32.xlu0 %v196
  %v198 = vpop.xlane.xlu0 %197
  %v199 = vadd.f32 %v110, %v198
  %v200 = vmul.f32 %v192, %v192
  %v201 = vmul.f32 %v194, %v194
  %v202 = vadd.f32 %v200, %v201
  %203 = vadd.xlane.f32.xlu0 %v202
  %v204 = vpop.xlane.xlu0 %203
  %v205 = vadd.f32 %v116, %v204
  %v206 = vmul.f32 %v199, 0.001953125
  %v207 = vmul.f32 %v205, 0.001953125
  %v208 = vmul.f32 %v206, %v206
  %v209 = vsub.f32 %v207, %v208
  %v210 = vmax.f32 %v209, 0.0
  %v211 = vadd.f32 %v210, 1e-05
  %v212 = vrsqrt.pop %v211
  %v213 = vmul.f32 %v22, %v212
  %v214 = vmul.f32 %v206, %v213
  %v215 = vsub.f32 %v23, %v214
  %217 = vset.pattern.permute.xlu0 0
  %218 = vperm.xlu0 %217, %v213
  %v219 = vpop.permute.xlu0 %218
  %v221 = vmul.f32 %v103, %v219
  %v222 = vmul.f32 %v105, %v219
  %224 = vset.pattern.permute.xlu0 0
  %225 = vperm.xlu0 %224, %v215
  %v226 = vpop.permute.xlu0 %225
  %v228 = vadd.f32 %v221, %v226
  %v229 = vadd.f32 %v222, %v226
  %v230 = vmul.f32 %v228, 0.5
  %v231 = vmul.f32 %v229, 0.5
  %v232 = vmul.f32 %v228, 0.70710677
  %v233 = vmul.f32 %v229, 0.70710677
  %v234 = verf.f32.pop %v232
  %v235 = verf.f32.pop %v233
  %v236 = vadd.f32 %v234, 1.0
  %v237 = vadd.f32 %v235, 1.0
  %v238 = vmul.f32 %v230, %v236
  %v239 = vmul.f32 %v231, %v237
  %vm240 = vcmask 64512
  %v242 = vsel %vm240, %v21, 0
  %244 = vmatprep.subr.mxu0 %v239
  %245 = vmatpush1.msra.mxu0 %v238
  %246 = vmatprep.subr.mxu0 0.0
  %247 = vmatpush1.msra.mxu0 0.0
  %248 = vmatprep.subr.mxu0 0.0
  %249 = vmatpush1.msra.mxu0 0.0
  %250 = vmatprep.subr.mxu0 0.0
  %251 = vmatpush1.msra.mxu0 0.0
  %252 = vmatprep.subr.mxu0 0.0
  %253 = vmatpush1.msra.mxu0 0.0
  %254 = vmatprep.subr.mxu0 0.0
  %255 = vmatpush1.msra.mxu0 0.0
  %256 = vmatprep.subr.mxu0 0.0
  %257 = vmatpush1.msra.mxu0 0.0
  %258 = vmatprep.subr.mxu0 0.0
  %259 = vmatpush1.msra.mxu0 0.0
  %260 = vmatprep.subr.mxu0 0.0
  %261 = vmatpush1.msra.mxu0 0.0
  %262 = vmatprep.subr.mxu0 0.0
  %263 = vmatpush1.msra.mxu0 0.0
  %264 = vmatprep.subr.mxu0 0.0
  %265 = vmatpush1.msra.mxu0 0.0
  %266 = vmatprep.subr.mxu0 0.0
  %267 = vmatpush1.msra.mxu0 0.0
  %268 = vmatprep.subr.mxu0 0.0
  %269 = vmatpush1.msra.mxu0 0.0
  %270 = vmatprep.subr.mxu0 0.0
  %271 = vmatpush1.msra.mxu0 0.0
  %272 = vmatprep.subr.mxu0 0.0
  %273 = vmatpush1.msra.mxu0 0.0
  %274 = vmatprep.subr.mxu0 0.0
  %275 = vmatpush1.msra.mxu0 0.0
  %276 = vmatprep.subr.mxu0 0.0
  %277 = vmatpush1.msra.mxu0 0.0
  %278 = vmatprep.subr.mxu0 0.0
  %279 = vmatpush1.msra.mxu0 0.0
  %280 = vmatprep.subr.mxu0 0.0
  %281 = vmatpush1.msra.mxu0 0.0
  %282 = vmatprep.subr.mxu0 0.0
  %283 = vmatpush1.msra.mxu0 0.0
  %284 = vmatprep.subr.mxu0 0.0
  %285 = vmatpush1.msra.mxu0 0.0
  %286 = vmatprep.subr.mxu0 0.0
  %287 = vmatpush1.msra.mxu0 0.0
  %288 = vmatprep.subr.mxu0 0.0
  %289 = vmatpush1.msra.mxu0 0.0
  %290 = vmatprep.subr.mxu0 0.0
  %291 = vmatpush1.msra.mxu0 0.0
  %292 = vmatprep.subr.mxu0 0.0
  %293 = vmatpush1.msra.mxu0 0.0
  %294 = vmatprep.subr.mxu0 0.0
  %295 = vmatpush1.msra.mxu0 0.0
  %296 = vmatprep.subr.mxu0 0.0
  %297 = vmatpush1.msra.mxu0 0.0
  %298 = vmatprep.subr.mxu0 0.0
  %299 = vmatpush1.msra.mxu0 0.0
  %300 = vmatprep.subr.mxu0 0.0
  %301 = vmatpush1.msra.mxu0 0.0
  %302 = vmatprep.subr.mxu0 0.0
  %303 = vmatpush1.msra.mxu0 0.0
  %304 = vmatprep.subr.mxu0 0.0
  %305 = vmatpush1.msra.mxu0 0.0
  %306 = vmatprep.subr.mxu0 0.0
  %307 = vmatpush1.msra.mxu0 0.0
  %308 = vmatprep.mubr.f32.mxu0 0.0
  %309 = vmatmul.mubr.f32.gmra.mrb[0].mxu0 %v242
  %v310 = vpop.f32.mrb[0].mxu0
  %v311 = vadd.f32 0.0, %v310
  %v312 = vpop.f32.mrb[0].mxu0
  %v313 = vadd.f32 0.0, %v312
  %314 = vdwg.mxu0
  %v315 = vadd.f32 %v311, %v313
  %316 = vadd.xlane.f32.xlu0 %v315
  %v317 = vpop.xlane.xlu0 %316
  %v318 = vadd.f32 %v317, 0.0
  %v319 = vmul.f32 %v311, %v311
  %v320 = vmul.f32 %v313, %v313
  %v321 = vadd.f32 %v319, %v320
  %322 = vadd.xlane.f32.xlu0 %v321
  %v323 = vpop.xlane.xlu0 %322
  %v324 = vadd.f32 %v323, 0.0
  %v325 = vmul.f32 %v192, %v219
  %v326 = vmul.f32 %v194, %v219
  %v327 = vadd.f32 %v325, %v226
  %v328 = vadd.f32 %v326, %v226
  %v329 = vmul.f32 %v327, 0.5
  %v330 = vmul.f32 %v328, 0.5
  %v331 = vmul.f32 %v327, 0.70710677
  %v332 = vmul.f32 %v328, 0.70710677
  %v333 = verf.f32.pop %v331
  %v334 = verf.f32.pop %v332
  %v335 = vadd.f32 %v333, 1.0
  %v336 = vadd.f32 %v334, 1.0
  %v337 = vmul.f32 %v329, %v335
  %v338 = vmul.f32 %v330, %v336
  %339 = vmatprep.subr.mxu0 %v338
  %340 = vmatpush1.msra.mxu0 %v337
  %341 = vmatprep.subr.mxu0 0.0
  %342 = vmatpush1.msra.mxu0 0.0
  %343 = vmatprep.subr.mxu0 0.0
  %344 = vmatpush1.msra.mxu0 0.0
  %345 = vmatprep.subr.mxu0 0.0
  %346 = vmatpush1.msra.mxu0 0.0
  %347 = vmatprep.subr.mxu0 0.0
  %348 = vmatpush1.msra.mxu0 0.0
  %349 = vmatprep.subr.mxu0 0.0
  %350 = vmatpush1.msra.mxu0 0.0
  %351 = vmatprep.subr.mxu0 0.0
  %352 = vmatpush1.msra.mxu0 0.0
  %353 = vmatprep.subr.mxu0 0.0
  %354 = vmatpush1.msra.mxu0 0.0
  %355 = vmatprep.subr.mxu0 0.0
  %356 = vmatpush1.msra.mxu0 0.0
  %357 = vmatprep.subr.mxu0 0.0
  %358 = vmatpush1.msra.mxu0 0.0
  %359 = vmatprep.subr.mxu0 0.0
  %360 = vmatpush1.msra.mxu0 0.0
  %361 = vmatprep.subr.mxu0 0.0
  %362 = vmatpush1.msra.mxu0 0.0
  %363 = vmatprep.subr.mxu0 0.0
  %364 = vmatpush1.msra.mxu0 0.0
  %365 = vmatprep.subr.mxu0 0.0
  %366 = vmatpush1.msra.mxu0 0.0
  %367 = vmatprep.subr.mxu0 0.0
  %368 = vmatpush1.msra.mxu0 0.0
  %369 = vmatprep.subr.mxu0 0.0
  %370 = vmatpush1.msra.mxu0 0.0
  %371 = vmatprep.subr.mxu0 0.0
  %372 = vmatpush1.msra.mxu0 0.0
  %373 = vmatprep.subr.mxu0 0.0
  %374 = vmatpush1.msra.mxu0 0.0
  %375 = vmatprep.subr.mxu0 0.0
  %376 = vmatpush1.msra.mxu0 0.0
  %377 = vmatprep.subr.mxu0 0.0
  %378 = vmatpush1.msra.mxu0 0.0
  %379 = vmatprep.subr.mxu0 0.0
  %380 = vmatpush1.msra.mxu0 0.0
  %381 = vmatprep.subr.mxu0 0.0
  %382 = vmatpush1.msra.mxu0 0.0
  %383 = vmatprep.subr.mxu0 0.0
  %384 = vmatpush1.msra.mxu0 0.0
  %385 = vmatprep.subr.mxu0 0.0
  %386 = vmatpush1.msra.mxu0 0.0
  %387 = vmatprep.subr.mxu0 0.0
  %388 = vmatpush1.msra.mxu0 0.0
  %389 = vmatprep.subr.mxu0 0.0
  %390 = vmatpush1.msra.mxu0 0.0
  %391 = vmatprep.subr.mxu0 0.0
  %392 = vmatpush1.msra.mxu0 0.0
  %393 = vmatprep.subr.mxu0 0.0
  %394 = vmatpush1.msra.mxu0 0.0
  %395 = vmatprep.subr.mxu0 0.0
  %396 = vmatpush1.msra.mxu0 0.0
  %397 = vmatprep.subr.mxu0 0.0
  %398 = vmatpush1.msra.mxu0 0.0
  %399 = vmatprep.subr.mxu0 0.0
  %400 = vmatpush1.msra.mxu0 0.0
  %401 = vmatprep.subr.mxu0 0.0
  %402 = vmatpush1.msra.mxu0 0.0
  %403 = vmatprep.mubr.f32.mxu0 0.0
  %404 = vmatmul.mubr.f32.gmra.mrb[0].mxu0 %v242
  %v405 = vpop.f32.mrb[0].mxu0
  %v406 = vadd.f32 0.0, %v405
  %v407 = vpop.f32.mrb[0].mxu0
  %v408 = vadd.f32 0.0, %v407
  %409 = vdwg.mxu0
  %v410 = vadd.f32 %v406, %v408
  %411 = vadd.xlane.f32.xlu0 %v410
  %v412 = vpop.xlane.xlu0 %411
  %v413 = vadd.f32 %v318, %v412
  %v414 = vmul.f32 %v406, %v406
  %v415 = vmul.f32 %v408, %v408
  %v416 = vadd.f32 %v414, %v415
  %417 = vadd.xlane.f32.xlu0 %v416
  %v418 = vpop.xlane.xlu0 %417
  %v419 = vadd.f32 %v324, %v418
  %v420 = vmul.f32 %v413, 0.001953125
  %v421 = vmul.f32 %v419, 0.001953125
  %v422 = vmul.f32 %v420, %v420
  %v423 = vsub.f32 %v421, %v422
  %v424 = vmax.f32 %v423, 0.0
  %v425 = vadd.f32 %v424, 1e-05
  %v426 = vrsqrt.pop %v425
  %v427 = vmul.f32 %v22, %v426
  %v428 = vmul.f32 %v420, %v427
  %v429 = vsub.f32 %v23, %v428
  %431 = vset.pattern.permute.xlu0 0
  %432 = vperm.xlu0 %431, %v427
  %v433 = vpop.permute.xlu0 %432
  %v435 = vmul.f32 %v311, %v433
  %v436 = vmul.f32 %v313, %v433
  %438 = vset.pattern.permute.xlu0 0
  %439 = vperm.xlu0 %438, %v429
  %v440 = vpop.permute.xlu0 %439
  %v442 = vadd.f32 %v435, %v440
  %v443 = vadd.f32 %v436, %v440
  %v444 = vmul.f32 %v442, 0.5
  %v445 = vmul.f32 %v443, 0.5
  %v446 = vmul.f32 %v442, 0.70710677
  %v447 = vmul.f32 %v443, 0.70710677
  %v448 = verf.f32.pop %v446
  %v449 = verf.f32.pop %v447
  %v450 = vadd.f32 %v448, 1.0
  %v451 = vadd.f32 %v449, 1.0
  %v452 = vmul.f32 %v444, %v450
  %v453 = vmul.f32 %v445, %v451
  %454 = vst [vmem:[%s5] sm:$0xff] %v452
  %455 = vst [vmem:[%s5 + $0x8] sm:$0xff] %v453
  %v456 = vld [vmem:[%s117] sm:$0xff]
  %v458 = vcombine.high %v456, %v456
  %v459 = vsel %vm31, %v456, 0
  %v461 = vsel %vm31, %v458, 0
  %463 = vmatprep.subr.mxu0 %v461
  %464 = vmatpush1.msra.mxu0 %v459
  %465 = vmatprep.subr.mxu0 0.0
  %466 = vmatpush1.msra.mxu0 0.0
  %467 = vmatprep.subr.mxu0 0.0
  %468 = vmatpush1.msra.mxu0 0.0
  %469 = vmatprep.subr.mxu0 0.0
  %470 = vmatpush1.msra.mxu0 0.0
  %471 = vmatprep.subr.mxu0 0.0
  %472 = vmatpush1.msra.mxu0 0.0
  %473 = vmatprep.subr.mxu0 0.0
  %474 = vmatpush1.msra.mxu0 0.0
  %475 = vmatprep.subr.mxu0 0.0
  %476 = vmatpush1.msra.mxu0 0.0
  %477 = vmatprep.subr.mxu0 0.0
  %478 = vmatpush1.msra.mxu0 0.0
  %479 = vmatprep.subr.mxu0 0.0
  %480 = vmatpush1.msra.mxu0 0.0
  %481 = vmatprep.subr.mxu0 0.0
  %482 = vmatpush1.msra.mxu0 0.0
  %483 = vmatprep.subr.mxu0 0.0
  %484 = vmatpush1.msra.mxu0 0.0
  %485 = vmatprep.subr.mxu0 0.0
  %486 = vmatpush1.msra.mxu0 0.0
  %487 = vmatprep.subr.mxu0 0.0
  %488 = vmatpush1.msra.mxu0 0.0
  %489 = vmatprep.subr.mxu0 0.0
  %490 = vmatpush1.msra.mxu0 0.0
  %491 = vmatprep.subr.mxu0 0.0
  %492 = vmatpush1.msra.mxu0 0.0
  %493 = vmatprep.subr.mxu0 0.0
  %494 = vmatpush1.msra.mxu0 0.0
  %495 = vmatprep.subr.mxu0 0.0
  %496 = vmatpush1.msra.mxu0 0.0
  %497 = vmatprep.subr.mxu0 0.0
  %498 = vmatpush1.msra.mxu0 0.0
  %499 = vmatprep.subr.mxu0 0.0
  %500 = vmatpush1.msra.mxu0 0.0
  %501 = vmatprep.subr.mxu0 0.0
  %502 = vmatpush1.msra.mxu0 0.0
  %503 = vmatprep.subr.mxu0 0.0
  %504 = vmatpush1.msra.mxu0 0.0
  %505 = vmatprep.subr.mxu0 0.0
  %506 = vmatpush1.msra.mxu0 0.0
  %507 = vmatprep.subr.mxu0 0.0
  %508 = vmatpush1.msra.mxu0 0.0
  %509 = vmatprep.subr.mxu0 0.0
  %510 = vmatpush1.msra.mxu0 0.0
  %511 = vmatprep.subr.mxu0 0.0
  %512 = vmatpush1.msra.mxu0 0.0
  %513 = vmatprep.subr.mxu0 0.0
  %514 = vmatpush1.msra.mxu0 0.0
  %515 = vmatprep.subr.mxu0 0.0
  %516 = vmatpush1.msra.mxu0 0.0
  %517 = vmatprep.subr.mxu0 0.0
  %518 = vmatpush1.msra.mxu0 0.0
  %519 = vmatprep.subr.mxu0 0.0
  %520 = vmatpush1.msra.mxu0 0.0
  %521 = vmatprep.subr.mxu0 0.0
  %522 = vmatpush1.msra.mxu0 0.0
  %523 = vmatprep.subr.mxu0 0.0
  %524 = vmatpush1.msra.mxu0 0.0
  %525 = vmatprep.subr.mxu0 0.0
  %526 = vmatpush1.msra.mxu0 0.0
  %527 = vmatprep.mubr.f32.mxu0 0.0
  %528 = vmatmul.mubr.f32.gmra.mrb[0].mxu0 %v29
  %v529 = vpop.f32.mrb[0].mxu0
  %v530 = vadd.f32 0.0, %v529
  %v531 = vpop.f32.mrb[0].mxu0
  %v532 = vadd.f32 0.0, %v531
  %533 = vdwg.mxu0
  %v534 = vmul.f32 %v530, %v219
  %v535 = vmul.f32 %v532, %v219
  %v536 = vadd.f32 %v534, %v226
  %v537 = vadd.f32 %v535, %v226
  %v538 = vmul.f32 %v536, 0.5
  %v539 = vmul.f32 %v537, 0.5
  %v540 = vmul.f32 %v536, 0.70710677
  %v541 = vmul.f32 %v537, 0.70710677
  %v542 = verf.f32.pop %v540
  %v543 = verf.f32.pop %v541
  %v544 = vadd.f32 %v542, 1.0
  %v545 = vadd.f32 %v543, 1.0
  %v546 = vmul.f32 %v538, %v544
  %v547 = vmul.f32 %v539, %v545
  %548 = vmatprep.subr.mxu0 %v547
  %549 = vmatpush1.msra.mxu0 %v546
  %550 = vmatprep.subr.mxu0 0.0
  %551 = vmatpush1.msra.mxu0 0.0
  %552 = vmatprep.subr.mxu0 0.0
  %553 = vmatpush1.msra.mxu0 0.0
  %554 = vmatprep.subr.mxu0 0.0
  %555 = vmatpush1.msra.mxu0 0.0
  %556 = vmatprep.subr.mxu0 0.0
  %557 = vmatpush1.msra.mxu0 0.0
  %558 = vmatprep.subr.mxu0 0.0
  %559 = vmatpush1.msra.mxu0 0.0
  %560 = vmatprep.subr.mxu0 0.0
  %561 = vmatpush1.msra.mxu0 0.0
  %562 = vmatprep.subr.mxu0 0.0
  %563 = vmatpush1.msra.mxu0 0.0
  %564 = vmatprep.subr.mxu0 0.0
  %565 = vmatpush1.msra.mxu0 0.0
  %566 = vmatprep.subr.mxu0 0.0
  %567 = vmatpush1.msra.mxu0 0.0
  %568 = vmatprep.subr.mxu0 0.0
  %569 = vmatpush1.msra.mxu0 0.0
  %570 = vmatprep.subr.mxu0 0.0
  %571 = vmatpush1.msra.mxu0 0.0
  %572 = vmatprep.subr.mxu0 0.0
  %573 = vmatpush1.msra.mxu0 0.0
  %574 = vmatprep.subr.mxu0 0.0
  %575 = vmatpush1.msra.mxu0 0.0
  %576 = vmatprep.subr.mxu0 0.0
  %577 = vmatpush1.msra.mxu0 0.0
  %578 = vmatprep.subr.mxu0 0.0
  %579 = vmatpush1.msra.mxu0 0.0
  %580 = vmatprep.subr.mxu0 0.0
  %581 = vmatpush1.msra.mxu0 0.0
  %582 = vmatprep.subr.mxu0 0.0
  %583 = vmatpush1.msra.mxu0 0.0
  %584 = vmatprep.subr.mxu0 0.0
  %585 = vmatpush1.msra.mxu0 0.0
  %586 = vmatprep.subr.mxu0 0.0
  %587 = vmatpush1.msra.mxu0 0.0
  %588 = vmatprep.subr.mxu0 0.0
  %589 = vmatpush1.msra.mxu0 0.0
  %590 = vmatprep.subr.mxu0 0.0
  %591 = vmatpush1.msra.mxu0 0.0
  %592 = vmatprep.subr.mxu0 0.0
  %593 = vmatpush1.msra.mxu0 0.0
  %594 = vmatprep.subr.mxu0 0.0
  %595 = vmatpush1.msra.mxu0 0.0
  %596 = vmatprep.subr.mxu0 0.0
  %597 = vmatpush1.msra.mxu0 0.0
  %598 = vmatprep.subr.mxu0 0.0
  %599 = vmatpush1.msra.mxu0 0.0
  %600 = vmatprep.subr.mxu0 0.0
  %601 = vmatpush1.msra.mxu0 0.0
  %602 = vmatprep.subr.mxu0 0.0
  %603 = vmatpush1.msra.mxu0 0.0
  %604 = vmatprep.subr.mxu0 0.0
  %605 = vmatpush1.msra.mxu0 0.0
  %606 = vmatprep.subr.mxu0 0.0
  %607 = vmatpush1.msra.mxu0 0.0
  %608 = vmatprep.subr.mxu0 0.0
  %609 = vmatpush1.msra.mxu0 0.0
  %610 = vmatprep.subr.mxu0 0.0
  %611 = vmatpush1.msra.mxu0 0.0
  %612 = vmatprep.mubr.f32.mxu0 0.0
  %613 = vmatmul.mubr.f32.gmra.mrb[0].mxu0 %v242
  %v614 = vpop.f32.mrb[0].mxu0
  %v615 = vadd.f32 0.0, %v614
  %v616 = vpop.f32.mrb[0].mxu0
  %v617 = vadd.f32 0.0, %v616
  %618 = vdwg.mxu0
  %v619 = vmul.f32 %v615, %v433
  %v620 = vmul.f32 %v617, %v433
  %v621 = vadd.f32 %v619, %v440
  %v622 = vadd.f32 %v620, %v440
  %v623 = vmul.f32 %v621, 0.5
  %v624 = vmul.f32 %v622, 0.5
  %v625 = vmul.f32 %v621, 0.70710677
  %v626 = vmul.f32 %v622, 0.70710677
  %v627 = verf.f32.pop %v625
  %v628 = verf.f32.pop %v626
  %v629 = vadd.f32 %v627, 1.0
  %v630 = vadd.f32 %v628, 1.0
  %v631 = vmul.f32 %v623, %v629
  %v632 = vmul.f32 %v624, %v630
  %s633 = scalar_lea.vmem %s5, 16
  %634 = vst [vmem:[%s633] sm:$0xff] %v631
  %635 = vst [vmem:[%s633 + $0x8] sm:$0xff] %v632
  // Predicated region
  $region22: #{conv_att_block.1} parent=0 // pred_check
    _
  $region23: #{conv_att_block.1} parent=0 // pred_check_branch
    %637 = sbr.rel (0) target = $region25
  $region24: #{conv_att_block.1} parent=0 // pred_region
    _
  $region25: #{conv_att_block.1} parent=0 // pred_fallthru
    _
  // Predicated region
  $region26: #{conv_att_block.1} parent=0 // pred_check
    _
  $region27: #{conv_att_block.1} parent=0 // pred_check_branch
    %639 = sbr.rel (0) target = $region29
  $region28: #{conv_att_block.1} parent=0 // pred_region
    _
  $region29: #{conv_att_block.1} parent=0 // pred_fallthru
    _

</llo_original>
